<compile_context>
chip_gen: v5e
topology: v5e:2x2
jax: 0.10.0
libtpu: 0.0.40
codegen_flags: <defaults>
</compile_context>

<pallas_src>
import functools

import jax
import jax.numpy as jnp
from jax import lax
from jax.experimental import pallas as pl
from jax.experimental.pallas import tpu as pltpu


_CHUNK = 128      # gather rows per chunk (multiple of 8; divides every TB)
_UNROLL = 8       # DMA-issue unroll factor


def _round_up(x: int, m: int) -> int:
    return (x + m - 1) // m * m


def _vmem_budget_bytes() -> int:
    """~70% of physical VMEM (v5e/v6e: 128 MiB, v7x: 64 MiB); safe fallback."""
    try:
        phys = int(pltpu.get_tpu_info().vmem_capacity_bytes)
    except Exception:
        phys = 64 * 1024 * 1024          # assume the smallest (v7x) if query fails
    return int(phys * 0.70)              # headroom for pipeline buffers / regalloc


def _dot_rows_to_lane_row(prod):
    """(R, D) f32 -> (1, R) f32 row of per-row sums, produced lane-dense.

    sum_d prod[r, d] is computed as ones(1, D) @ prod^T on the MXU (standard
    "trans_b" dot_general, same pattern as q @ k^T in attention kernels): no
    (R, D) XLU transpose, no sublane reduce, and the result lands directly in
    the lane-dense layout the (1, TB) output block wants.
    """
    _, d = prod.shape
    ones_row = jnp.ones((1, d), jnp.float32)
    return lax.dot_general(ones_row, prod,
                           dimension_numbers=(((1,), (1,)), ((), ())),
                           preferred_element_type=jnp.float32)


# --------------------------------------------------------------------------
# Path 1: VMEM-resident tables, one-hot MXU gather (no per-row HBM DMAs).
# --------------------------------------------------------------------------
def _svd_resident(u_tbl, i_tbl, bias_pad, u_idx_col, i_idx_col,
                  *, tb, b_pad, vmem_limit):
    n_u, d = map(int, u_tbl.shape)
    n_i = int(i_tbl.shape[0])
    n_tiles = b_pad // tb

    def kernel(u_idx_ref, i_idx_ref, u_tbl_ref, i_tbl_ref, bias_ref, out_ref):
        rows_u = u_idx_ref[...]                                      # (TB, 1) int32
        rows_i = i_idx_ref[...]                                      # (TB, 1) int32
        u_all = u_tbl_ref[...].astype(jnp.float32)                   # (Nu, D)
        i_all = i_tbl_ref[...].astype(jnp.float32)                   # (Ni, D)
        # Exact one-hot gather on the MXU; tables stay VMEM-resident.
        oh_u = (rows_u == lax.broadcasted_iota(jnp.int32, (tb, n_u), 1)
                ).astype(jnp.float32)                                # (TB, Nu)
        oh_i = (rows_i == lax.broadcasted_iota(jnp.int32, (tb, n_i), 1)
                ).astype(jnp.float32)                                # (TB, Ni)
        u_rows = jnp.dot(oh_u, u_all, preferred_element_type=jnp.float32)   # (TB, D)
        i_rows = jnp.dot(oh_i, i_all, preferred_element_type=jnp.float32)   # (TB, D)
        prod = u_rows * i_rows
        out_ref[...] = _dot_rows_to_lane_row(prod) + bias_ref[...]          # (1, TB)

    return pl.pallas_call(
        kernel,
        out_shape=jax.ShapeDtypeStruct((1, b_pad), jnp.float32),
        grid=(n_tiles,),
        in_specs=[
            pl.BlockSpec((tb, 1), lambda t: (t, 0)),      # user row ids (column)
            pl.BlockSpec((tb, 1), lambda t: (t, 0)),      # item row ids (column)
            pl.BlockSpec((n_u, d), lambda t: (0, 0)),     # resident user table
            pl.BlockSpec((n_i, d), lambda t: (0, 0)),     # resident item table
            pl.BlockSpec((1, tb), lambda t: (0, t)),      # combined per-row biases
        ],
        out_specs=pl.BlockSpec((1, tb), lambda t: (0, t)),
        compiler_params=pltpu.CompilerParams(
            dimension_semantics=("parallel",),            # v7x: both TCs share tiles
            vmem_limit_bytes=vmem_limit,
        ),
    )(u_idx_col, i_idx_col, u_tbl, i_tbl, bias_pad)


# --------------------------------------------------------------------------
# Path 2: HBM row-gather, chunked + double-buffered, aggregate waits.
# --------------------------------------------------------------------------
def _svd_hbm_gather(u_tbl, i_tbl, bias_pad, u_idx_pad, i_idx_pad,
                    *, tb, b_pad, vmem_limit):
    d = int(u_tbl.shape[1])
    n_tiles = b_pad // tb
    chunk = min(_CHUNK, tb)
    n_chunks = tb // chunk

    def kernel(u_idx_ref, i_idx_ref,             # scalar-prefetched ids (SMEM)
               u_tbl_ref, i_tbl_ref, bias_ref,   # HBM, HBM, VMEM (1, TB)
               out_ref,                           # VMEM (1, TB), lane-dense
               u_buf, i_buf, sems):               # (2, CHUNK, D) x2, DMA sems (2, 2)
        base = pl.program_id(0) * tb

        def issue(c, slot):
            """Start the per-row gather DMAs for chunk `c` into buffer `slot`."""
            off = base + c * chunk

            def grp(g, carry):                    # 8x unrolled issue: keep the
                j0 = g * _UNROLL                  # scalar/misc slots fed
                for r in range(_UNROLL):
                    j = j0 + r
                    pltpu.make_async_copy(
                        u_tbl_ref.at[u_idx_ref[off + j]], u_buf.at[slot, j],
                        sems.at[0, slot]).start()
                    pltpu.make_async_copy(
                        i_tbl_ref.at[i_idx_ref[off + j]], i_buf.at[slot, j],
                        sems.at[1, slot]).start()
                return carry

            lax.fori_loop(0, chunk // _UNROLL, grp, 0)

        def wait(slot):
            # One aggregate wait per table per chunk: the DMA semaphore accumulates
            # the bytes of every row copy, so a descriptor sized to the whole chunk
            # buffer waits for all `chunk` row copies at once (no per-row waits, no
            # repeated SMEM sst->sld forwarding breaks).
            pltpu.make_async_copy(u_buf.at[slot], u_buf.at[slot], sems.at[0, slot]).wait()
            pltpu.make_async_copy(i_buf.at[slot], i_buf.at[slot], sems.at[1, slot]).wait()

        issue(0, 0)                               # prime the pipeline

        def chunk_body(c, carry):
            slot = c & 1
            # Prefetch the next chunk into the other buffer before blocking on this
            # one, so issue + compute overlap the in-flight HBM DMAs.
            @pl.when(c + 1 < n_chunks)
            def _():
                issue(c + 1, 1 - slot)
            wait(slot)
            u_rows = u_buf[slot].astype(jnp.float32)            # (CHUNK, D)
            i_rows = i_buf[slot].astype(jnp.float32)
            drow = _dot_rows_to_lane_row(u_rows * i_rows)       # (1, CHUNK) lane-dense
            off = pl.multiple_of(c * chunk, chunk)
            out_ref[:, pl.ds(off, chunk)] = drow + bias_ref[:, pl.ds(off, chunk)]
            return carry

        lax.fori_loop(0, n_chunks, chunk_body, 0)

    grid_spec = pltpu.PrefetchScalarGridSpec(
        num_scalar_prefetch=2,
        grid=(n_tiles,),
        in_specs=[
            pl.BlockSpec(memory_space=pl.ANY),                        # uEmbd (HBM)
            pl.BlockSpec(memory_space=pl.ANY),                        # iEmbd (HBM)
            pl.BlockSpec((1, tb), lambda t, u_ids, i_ids: (0, t)),    # biases
        ],
        out_specs=pl.BlockSpec((1, tb), lambda t, u_ids, i_ids: (0, t)),
        scratch_shapes=[
            pltpu.VMEM((2, chunk, d), u_tbl.dtype),   # double-buffered user rows
            pltpu.VMEM((2, chunk, d), i_tbl.dtype),   # double-buffered item rows
            pltpu.SemaphoreType.DMA((2, 2)),          # (table, slot)
        ],
    )
    return pl.pallas_call(
        kernel,
        out_shape=jax.ShapeDtypeStruct((1, b_pad), jnp.float32),
        grid_spec=grid_spec,
        compiler_params=pltpu.CompilerParams(
            dimension_semantics=("parallel",),        # tiles are fully independent
            vmem_limit_bytes=vmem_limit,
        ),
    )(u_idx_pad, i_idx_pad, u_tbl, i_tbl, bias_pad)


# --------------------------------------------------------------------------
# Wrapper: padding, bias pre-combination, tile sizing, path selection.
# --------------------------------------------------------------------------
def svd_forward(u_embd_table, i_embd_table, u_bias_table, i_bias_table,
                overall_bias, user_idx, item_idx, *, tile_b=512, force_path=None):
    """pred[b] = <uEmbd[u_b], iEmbd[i_b]> + uBias[u_b] + iBias[i_b] + overAllBias."""
    B = int(user_idx.shape[0])
    n_u, D = map(int, u_embd_table.shape)
    n_i, D_i = map(int, i_embd_table.shape)
    assert D_i == D, "embedding dims must match"

    # Batch tile: multiple of 128 (lane-dense (1, TB) blocks); clamp down so that
    # there are >= 2 tiles whenever B allows it (v7x megacore gets both cores).
    tile_b = max(128, (int(tile_b) // 128) * 128)
    TB = min(tile_b, _round_up(B, 128))
    while TB > 128 and pl.cdiv(B, TB) < 2:
        TB = max(128, ((TB // 2) // 128) * 128)
    B_pad = _round_up(B, TB)

    user_idx = user_idx.astype(jnp.int32)
    item_idx = item_idx.astype(jnp.int32)
    # Pad with row 0 (a valid row); padded lanes are sliced off at the end.
    u_idx_pad = jnp.zeros((B_pad,), jnp.int32).at[:B].set(user_idx)
    i_idx_pad = jnp.zeros((B_pad,), jnp.int32).at[:B].set(item_idx)

    # Combined per-row bias (uBias + iBias + overAllBias): 4 B/row -> XLA glue,
    # fed lane-dense as (1, TB) blocks.  reshape(-1) handles (N, 1) or (N,) tables.
    bias = (jnp.take(u_bias_table.reshape(-1), user_idx, axis=0)
            + jnp.take(i_bias_table.reshape(-1), item_idx, axis=0)
            + overall_bias.reshape(()).astype(jnp.float32)).astype(jnp.float32)
    bias_pad = jnp.zeros((1, B_pad), jnp.float32).at[0, :B].set(bias)

    vmem_budget = _vmem_budget_bytes()

    # Resident-path VMEM footprint estimate (lane padding included): 2x tables
    # (possible double buffering) + f32 one-hots + gathered rows/product + blocks.
    bytes_u = n_u * D * jnp.dtype(u_embd_table.dtype).itemsize
    bytes_i = n_i * D * jnp.dtype(i_embd_table.dtype).itemsize
    resident_bytes = (2 * (bytes_u + bytes_i)
                      + 4 * TB * (_round_up(n_u, 128) + _round_up(n_i, 128))
                      + 4 * TB * _round_up(D, 128) * 3
                      + 4 * 4 * TB * 2)
    use_resident = resident_bytes <= vmem_budget
    if force_path == "resident":
        use_resident = True
    elif force_path == "gather":
        use_resident = False

    if use_resident:
        out = _svd_resident(u_embd_table, i_embd_table, bias_pad,
                            u_idx_pad.reshape(B_pad, 1), i_idx_pad.reshape(B_pad, 1),
                            tb=TB, b_pad=B_pad, vmem_limit=vmem_budget)
    else:
        out = _svd_hbm_gather(u_embd_table, i_embd_table, bias_pad,
                              u_idx_pad, i_idx_pad,
                              tb=TB, b_pad=B_pad, vmem_limit=vmem_budget)
    return out[0, :B]


if __name__ == "__main__":
    # Small synthetic setup consistent with the module's __init__.
    userNum, itemNum, dim = 50, 60, 32

    key = jax.random.PRNGKey(0)
    k_ue, k_ie, k_ub, k_ib, k_u, k_i, k_u2, k_i2 = jax.random.split(key, 8)

    # nn.Embedding default init ~ N(0, 1); overAllBias starts at 0.
    u_embd_table = jax.random.normal(k_ue, (userNum, dim), dtype=jnp.float32)
    i_embd_table = jax.random.normal(k_ie, (itemNum, dim), dtype=jnp.float32)
    u_bias_table = jax.random.normal(k_ub, (userNum, 1), dtype=jnp.float32)
    i_bias_table = jax.random.normal(k_ib, (itemNum, 1), dtype=jnp.float32)
    overall_bias = jnp.zeros((1,), dtype=jnp.float32)

    def reference(u_idx, i_idx):
        return (jnp.sum(u_embd_table[u_idx] * i_embd_table[i_idx], axis=1)
                + (u_bias_table[u_idx] + i_bias_table[i_idx]
                   + overall_bias).reshape(-1))

    # --- Path 1: VMEM-resident tables (auto-selected for these table sizes) ---
    B1 = 200
    u_idx1 = jax.random.randint(k_u, (B1,), 0, userNum, dtype=jnp.int32)
    i_idx1 = jax.random.randint(k_i, (B1,), 0, itemNum, dtype=jnp.int32)
    fwd_resident = jax.jit(functools.partial(svd_forward, tile_b=512))
    pred1 = jax.block_until_ready(
        fwd_resident(u_embd_table, i_embd_table, u_bias_table, i_bias_table,
                     overall_bias, u_idx1, i_idx1))
    ref1 = reference(u_idx1, i_idx1)
    assert pred1.shape == (B1,)
    assert jnp.allclose(pred1, ref1, atol=1e-4, rtol=1e-5), \
        float(jnp.max(jnp.abs(pred1 - ref1)))

    # --- Path 2: HBM row-gather with chunked double-buffering (forced, so both
    #     kernels are exercised; B2 gives 2 batch tiles x 4 chunks per tile) ---
    B2 = 640
    u_idx2 = jax.random.randint(k_u2, (B2,), 0, userNum, dtype=jnp.int32)
    i_idx2 = jax.random.randint(k_i2, (B2,), 0, itemNum, dtype=jnp.int32)
    fwd_gather = jax.jit(functools.partial(svd_forward, tile_b=512,
                                           force_path="gather"))
    pred2 = jax.block_until_ready(
        fwd_gather(u_embd_table, i_embd_table, u_bias_table, i_bias_table,
                   overall_bias, u_idx2, i_idx2))
    ref2 = reference(u_idx2, i_idx2)
    assert pred2.shape == (B2,)
    assert jnp.allclose(pred2, ref2, atol=1e-4, rtol=1e-5), \
        float(jnp.max(jnp.abs(pred2 - ref2)))

    print("KERNEL_OK")
</pallas_src>

<mosaic_0001>
module attributes {stable_mosaic.version = 11 : i64} {
  func.func @kernel(%arg0: i32, %arg1: memref<128x1xi32, #tpu.memory_space<vmem>>, %arg2: memref<128x1xi32, #tpu.memory_space<vmem>>, %arg3: memref<50x32xf32, #tpu.memory_space<vmem>>, %arg4: memref<60x32xf32, #tpu.memory_space<vmem>>, %arg5: memref<1x128xf32, #tpu.memory_space<vmem>>, %arg6: memref<1x128xf32, #tpu.memory_space<vmem>>) attributes {dimension_semantics = [#tpu.dimension_semantics<parallel>], iteration_bounds = array<i64: 2>, scalar_prefetch = 0 : i64, scratch_operands = 0 : i64, tpu.core_type = #tpu.core_type<tc>, window_params = [{transform_indices = @transform_0, window_bounds = array<i64: 128, 1>}, {transform_indices = @transform_1, window_bounds = array<i64: 128, 1>}, {pipeline_mode = #tpu.pipeline_mode<synchronous>, transform_indices = @transform_2, window_bounds = array<i64: 50, 32>}, {pipeline_mode = #tpu.pipeline_mode<synchronous>, transform_indices = @transform_3, window_bounds = array<i64: 60, 32>}, {transform_indices = @transform_4, window_bounds = array<i64: 1, 128>}, {transform_indices = @transform_5, window_bounds = array<i64: 1, 128>}]} {
    %c0 = arith.constant 0 : index
    %c0_0 = arith.constant 0 : index
    %0 = vector.load %arg1[%c0, %c0_0] : memref<128x1xi32, #tpu.memory_space<vmem>>, vector<128x1xi32>
    %c0_1 = arith.constant 0 : index
    %c0_2 = arith.constant 0 : index
    %1 = vector.load %arg2[%c0_1, %c0_2] : memref<128x1xi32, #tpu.memory_space<vmem>>, vector<128x1xi32>
    %c0_3 = arith.constant 0 : index
    %c0_4 = arith.constant 0 : index
    %2 = vector.load %arg3[%c0_3, %c0_4] : memref<50x32xf32, #tpu.memory_space<vmem>>, vector<50x32xf32>
    %c0_5 = arith.constant 0 : index
    %c0_6 = arith.constant 0 : index
    %3 = vector.load %arg4[%c0_5, %c0_6] : memref<60x32xf32, #tpu.memory_space<vmem>>, vector<60x32xf32>
    %4 = tpu.iota {dimensions = array<i32: 1>} : vector<128x50xi32>
    %5 = vector.broadcast %0 : vector<128x1xi32> to vector<128x50xi32>
    %6 = arith.cmpi eq, %5, %4 : vector<128x50xi32>
    %7 = arith.extui %6 : vector<128x50xi1> to vector<128x50xi32>
    %8 = arith.sitofp %7 : vector<128x50xi32> to vector<128x50xf32>
    %9 = tpu.iota {dimensions = array<i32: 1>} : vector<128x60xi32>
    %10 = vector.broadcast %1 : vector<128x1xi32> to vector<128x60xi32>
    %11 = arith.cmpi eq, %10, %9 : vector<128x60xi32>
    %12 = arith.extui %11 : vector<128x60xi1> to vector<128x60xi32>
    %13 = arith.sitofp %12 : vector<128x60xi32> to vector<128x60xf32>
    %cst = arith.constant dense<0.000000e+00> : vector<128x32xf32>
    %14 = tpu.matmul %8, %2, %cst {dimension_numbers = #tpu.dot_dimension_numbers<[1], [0], [0], [1], [0, 0, 1, 1], [], []>} : vector<128x50xf32>, vector<50x32xf32>, vector<128x32xf32> -> vector<128x32xf32>
    %cst_7 = arith.constant dense<0.000000e+00> : vector<128x32xf32>
    %15 = tpu.matmul %13, %3, %cst_7 {dimension_numbers = #tpu.dot_dimension_numbers<[1], [0], [0], [1], [0, 0, 1, 1], [], []>} : vector<128x60xf32>, vector<60x32xf32>, vector<128x32xf32> -> vector<128x32xf32>
    %16 = arith.mulf %14, %15 : vector<128x32xf32>
    %cst_8 = arith.constant 1.000000e+00 : f32
    %17 = vector.broadcast %cst_8 : f32 to vector<1x32xf32>
    %cst_9 = arith.constant dense<0.000000e+00> : vector<1x128xf32>
    %18 = tpu.matmul %17, %16, %cst_9 {dimension_numbers = #tpu.dot_dimension_numbers<[1], [1], [0], [0], [0, 0, 1, 0], [], []>} : vector<1x32xf32>, vector<128x32xf32>, vector<1x128xf32> -> vector<1x128xf32>
    %c0_10 = arith.constant 0 : index
    %c0_11 = arith.constant 0 : index
    %19 = vector.load %arg5[%c0_10, %c0_11] : memref<1x128xf32, #tpu.memory_space<vmem>>, vector<1x128xf32>
    %20 = arith.addf %18, %19 : vector<1x128xf32>
    %c0_12 = arith.constant 0 : index
    %c0_13 = arith.constant 0 : index
    %21 = vector.load %arg6[%c0_12, %c0_13] : memref<1x128xf32, #tpu.memory_space<vmem>>, vector<1x128xf32>
    tpu.vector_store %arg6[%c0_12, %c0_13], %20 {strides = array<i32>} : memref<1x128xf32, #tpu.memory_space<vmem>>, vector<1x128xf32>,
    return
  }
  func.func @transform_0(%arg0: i32) -> (i32, i32) {
    %c0_i32 = arith.constant 0 : i32
    %c0_i32_0 = arith.constant 0 : i32
    return %arg0, %c0_i32 : i32, i32
  }
  func.func @transform_1(%arg0: i32) -> (i32, i32) {
    %c0_i32 = arith.constant 0 : i32
    %c0_i32_0 = arith.constant 0 : i32
    return %arg0, %c0_i32 : i32, i32
  }
  func.func @transform_2(%arg0: i32) -> (i32, i32) {
    %c0_i32 = arith.constant 0 : i32
    %c0_i32_0 = arith.constant 0 : i32
    %c0_i32_1 = arith.constant 0 : i32
    return %c0_i32, %c0_i32_0 : i32, i32
  }
  func.func @transform_3(%arg0: i32) -> (i32, i32) {
    %c0_i32 = arith.constant 0 : i32
    %c0_i32_0 = arith.constant 0 : i32
    %c0_i32_1 = arith.constant 0 : i32
    return %c0_i32, %c0_i32_0 : i32, i32
  }
  func.func @transform_4(%arg0: i32) -> (i32, i32) {
    %c0_i32 = arith.constant 0 : i32
    %c0_i32_0 = arith.constant 0 : i32
    return %c0_i32, %arg0 : i32, i32
  }
  func.func @transform_5(%arg0: i32) -> (i32, i32) {
    %c0_i32 = arith.constant 0 : i32
    %c0_i32_0 = arith.constant 0 : i32
    return %c0_i32, %arg0 : i32, i32
  }
}

</mosaic_0001>

<llo_original>
// kernel: svd_forward.1
$region0: #{svd_forward.1}
  #allocation0 [shape = 'u32[]', space=smem, size = 0x4, offset = 0x4, fixed_abs, tag = 'smem constant byte address 0x4 - core index']
  #allocation1 [shape = 'u32[72,128]{1,0:T(1,128)}', space=vmem, size = 0x9000, scoped, tag = 'internal scratch']
  %s0 = inlined_call_operand.vmem [shape: s32[256,1], index: 0, kind: input, shape index: {}]
  %s1 = inlined_call_operand.vmem [shape: s32[256,1], index: 1, kind: input, shape index: {}]
  %s2 = inlined_call_operand.vmem [shape: f32[50,32], index: 2, kind: input, shape index: {}]
  %s3 = inlined_call_operand.vmem [shape: f32[60,32], index: 3, kind: input, shape index: {}]
  %s4 = inlined_call_operand.vmem [shape: f32[1,256], index: 4, kind: input, shape index: {}]
  %s5 = inlined_call_operand.hbm [shape: f32[1,256], index: 5, kind: output, shape index: {}]
  %s6 = sld [smem:[#allocation0]]
  $region53: #{svd_forward.1} parent=0
    _
  %s8 = ssub.s32 1, %s6
  %s9 = scalar_select 0, %s8, %s6
  $region1: #{svd_forward.1} parent=0
    #allocation2 [shape = 'u8[1024]{0}', space=vmem, size = 0x400, scoped, tag = 'output window, operand 0']
    #allocation3 [shape = 's32[2]{0}', space=sflag, size = 0x8, scoped, tag = 'scoped memory for svd_forward.1']
    %10 = vsyncpa [#allocation3], 0
    %s11 = scalar_lea.sflag [#allocation3], 1
    %12 = vsyncpa %s11, 0
    loop: start=0, step=1, limit=4
    $region2: #{svd_forward.1} parent=1 // loop_pre_header
      _
    $region3: #{svd_forward.1} parent=1 // loop_header
      %s14 = sphi 0, %s18
      %p15 = scmp.ge.s32.totalorder %s14, 4
      %s24 = sphi 0, %s26
      %s27 = sphi 0, %s24
      %s28 = sphi 0, %s27
      %s44 = sphi 0, %s28
      %s50 = sphi 0, %s52
      %s53 = sphi 0, %s50
      %s54 = sphi 0, %s53
      %s70 = sphi 0, %s54
      %s74 = sphi 0, %s74
      %s76 = sphi 0, %s74
      %s77 = sphi 0, %s76
      %s91 = sphi 0, %s77
      %s95 = sphi 0, %s95
      %s97 = sphi 0, %s95
      %s98 = sphi 0, %s97
      %s112 = sphi 0, %s98
      %s118 = sphi 0, %s120
      %s121 = sphi 0, %s118
      %s122 = sphi 0, %s121
      %s138 = sphi 0, %s122
      %s144 = sphi 0, %s146
      %s147 = sphi 0, %s144
      %s148 = sphi 0, %s147
      %s164 = sphi 0, %s148
    $region4: #{svd_forward.1} parent=1 // loop_header_branch
      %17 = sbr.rel (%p15) target = $region8
    $region5: #{svd_forward.1} parent=1 // loop_body
      %s19 = ssub.s32 %s14, 1
      %s20 = ssub.s32 %s14, 2
      %s21 = sadd.s32 %s14, 1
      %s22 = ssub.s32 %s14, %s21
      %p23 = scmp.eq.s32.totalorder %s22, 0
      %s25 = sadd.s32 %s24, 1
      %s26 = scalar_select %p23, %s24, %s25
      %p29 = pneg %p23
      %p30 = scmp.eq.s32.totalorder %s14, 1
      %p31 = por %p29, %p30
      %p32 = scmp.ne.s32.totalorder %s24, %s27
      %p33 = scmp.eq.s32.totalorder %s14, 0
      %p34 = por %p32, %p33
      %p35 = scmp.ne.s32.totalorder %s24, %s27
      %p36 = scmp.eq.s32.totalorder %s19, 1
      %p37 = por %p35, %p36
      %p38 = scmp.ne.s32.totalorder %s27, %s28
      %p39 = scmp.eq.s32.totalorder %s19, 0
      %p40 = por %p38, %p39
      %p41 = scmp.ne.s32.totalorder %s27, %s28
      %p42 = scmp.eq.s32.totalorder %s20, 1
      %p43 = por %p41, %p42
      %p45 = scmp.ne.s32.totalorder %s28, %s44
      %p46 = scmp.eq.s32.totalorder %s20, 0
      %p47 = por %p45, %p46
      %s48 = ssub.s32 %s14, %s21
      %p49 = scmp.eq.s32.totalorder %s48, 0
      %s51 = sadd.s32 %s50, 1
      %s52 = scalar_select %p49, %s50, %s51
      %p55 = pneg %p49
      %p56 = scmp.eq.s32.totalorder %s14, 1
      %p57 = por %p55, %p56
      %p58 = scmp.ne.s32.totalorder %s50, %s53
      %p59 = scmp.eq.s32.totalorder %s14, 0
      %p60 = por %p58, %p59
      %p61 = scmp.ne.s32.totalorder %s50, %s53
      %p62 = scmp.eq.s32.totalorder %s19, 1
      %p63 = por %p61, %p62
      %p64 = scmp.ne.s32.totalorder %s53, %s54
      %p65 = scmp.eq.s32.totalorder %s19, 0
      %p66 = por %p64, %p65
      %p67 = scmp.ne.s32.totalorder %s53, %s54
      %p68 = scmp.eq.s32.totalorder %s20, 1
      %p69 = por %p67, %p68
      %p71 = scmp.ne.s32.totalorder %s54, %s70
      %p72 = scmp.eq.s32.totalorder %s20, 0
      %p73 = por %p71, %p72
      %s75 = sadd.s32 %s74, 1
      %p78 = scmp.eq.s32.totalorder %s14, 1
      %p79 = scmp.ne.s32.totalorder %s74, %s76
      %p80 = scmp.eq.s32.totalorder %s14, 0
      %p81 = por %p79, %p80
      %p82 = scmp.ne.s32.totalorder %s74, %s76
      %p83 = scmp.eq.s32.totalorder %s19, 1
      %p84 = por %p82, %p83
      %p85 = scmp.ne.s32.totalorder %s76, %s77
      %p86 = scmp.eq.s32.totalorder %s19, 0
      %p87 = por %p85, %p86
      %p88 = scmp.ne.s32.totalorder %s76, %s77
      %p89 = scmp.eq.s32.totalorder %s20, 1
      %p90 = por %p88, %p89
      %p92 = scmp.ne.s32.totalorder %s77, %s91
      %p93 = scmp.eq.s32.totalorder %s20, 0
      %p94 = por %p92, %p93
      %s96 = sadd.s32 %s95, 1
      %p99 = scmp.eq.s32.totalorder %s14, 1
      %p100 = scmp.ne.s32.totalorder %s95, %s97
      %p101 = scmp.eq.s32.totalorder %s14, 0
      %p102 = por %p100, %p101
      %p103 = scmp.ne.s32.totalorder %s95, %s97
      %p104 = scmp.eq.s32.totalorder %s19, 1
      %p105 = por %p103, %p104
      %p106 = scmp.ne.s32.totalorder %s97, %s98
      %p107 = scmp.eq.s32.totalorder %s19, 0
      %p108 = por %p106, %p107
      %p109 = scmp.ne.s32.totalorder %s97, %s98
      %p110 = scmp.eq.s32.totalorder %s20, 1
      %p111 = por %p109, %p110
      %p113 = scmp.ne.s32.totalorder %s98, %s112
      %p114 = scmp.eq.s32.totalorder %s20, 0
      %p115 = por %p113, %p114
      %s116 = ssub.s32 %s14, %s21
      %p117 = scmp.eq.s32.totalorder %s116, 0
      %s119 = sadd.s32 %s118, 1
      %s120 = scalar_select %p117, %s118, %s119
      %p123 = pneg %p117
      %p124 = scmp.eq.s32.totalorder %s14, 1
      %p125 = por %p123, %p124
      %p126 = scmp.ne.s32.totalorder %s118, %s121
      %p127 = scmp.eq.s32.totalorder %s14, 0
      %p128 = por %p126, %p127
      %p129 = scmp.ne.s32.totalorder %s118, %s121
      %p130 = scmp.eq.s32.totalorder %s19, 1
      %p131 = por %p129, %p130
      %p132 = scmp.ne.s32.totalorder %s121, %s122
      %p133 = scmp.eq.s32.totalorder %s19, 0
      %p134 = por %p132, %p133
      %p135 = scmp.ne.s32.totalorder %s121, %s122
      %p136 = scmp.eq.s32.totalorder %s20, 1
      %p137 = por %p135, %p136
      %p139 = scmp.ne.s32.totalorder %s122, %s138
      %p140 = scmp.eq.s32.totalorder %s20, 0
      %p141 = por %p139, %p140
      %s142 = ssub.s32 %s14, %s21
      %p143 = scmp.eq.s32.totalorder %s142, 0
      %s145 = sadd.s32 %s144, 1
      %s146 = scalar_select %p143, %s144, %s145
      %p149 = pneg %p143
      %p150 = scmp.eq.s32.totalorder %s14, 1
      %p151 = por %p149, %p150
      %p152 = scmp.ne.s32.totalorder %s144, %s147
      %p153 = scmp.eq.s32.totalorder %s14, 0
      %p154 = por %p152, %p153
      %p155 = scmp.ne.s32.totalorder %s144, %s147
      %p156 = scmp.eq.s32.totalorder %s19, 1
      %p157 = por %p155, %p156
      %p158 = scmp.ne.s32.totalorder %s147, %s148
      %p159 = scmp.eq.s32.totalorder %s19, 0
      %p160 = por %p158, %p159
      %p161 = scmp.ne.s32.totalorder %s147, %s148
      %p162 = scmp.eq.s32.totalorder %s20, 1
      %p163 = por %p161, %p162
      %p165 = scmp.ne.s32.totalorder %s148, %s164
      %p166 = scmp.eq.s32.totalorder %s20, 0
      %p167 = por %p165, %p166
      %p168 = scmp.le.s32.totalorder 1, %s14
      %p169 = scmp.lt.s32.totalorder %s14, 3
      %p170 = pnand %p168, %p169
      %p171 = pneg %p170
      // Predicated region
      $region9: #{svd_forward.1} parent=5 // pred_check
        _
      $region10: #{svd_forward.1} parent=5 // pred_check_branch
        %173 = sbr.rel (%p170) target = $region12
      $region11: #{svd_forward.1} parent=5 // pred_region
        %s174 = ssub.s32 %s14, 1
        // Predicated region
        $region13: #{svd_forward.1} parent=11 // pred_check
          %p175 = pneg %p87
        $region14: #{svd_forward.1} parent=11 // pred_check_branch
          %177 = sbr.rel (%p175) target = $region16
        $region15: #{svd_forward.1} parent=11 // pred_region
          _
        $region16: #{svd_forward.1} parent=11 // pred_fallthru
          _
        // Predicated region
        $region17: #{svd_forward.1} parent=11 // pred_check
          %p178 = pneg %p108
        $region18: #{svd_forward.1} parent=11 // pred_check_branch
          %180 = sbr.rel (%p178) target = $region20
        $region19: #{svd_forward.1} parent=11 // pred_region
          _
        $region20: #{svd_forward.1} parent=11 // pred_fallthru
          _
      $region12: #{svd_forward.1} parent=5 // pred_fallthru
        _
      %p181 = scmp.lt.s32.totalorder %s14, 2
      // Predicated region
      $region21: #{svd_forward.1} parent=5 // pred_check
        %p182 = pneg %p181
      $region22: #{svd_forward.1} parent=5 // pred_check_branch
        %184 = sbr.rel (%p182) target = $region24
      $region23: #{svd_forward.1} parent=5 // pred_region
        // Predicated region
        $region25: #{svd_forward.1} parent=23 // pred_check
          %p185 = pneg %p34
        $region26: #{svd_forward.1} parent=23 // pred_check_branch
          %187 = sbr.rel (%p185) target = $region28
        $region27: #{svd_forward.1} parent=23 // pred_region
          %s188 = smul.u32 16, %s14
          %p189 = scmp.lt.s32.totalorder %s188, 31
          %s190 = scalar_select %p189, %s188, 31
          %s191 = smul.addr %s190, 8
          %s192 = scalar_lea.vmem %s0, %s191
          %s193 = smul.u32 16, %s14
        $region28: #{svd_forward.1} parent=23 // pred_fallthru
          _
        // Predicated region
        $region29: #{svd_forward.1} parent=23 // pred_check
          %p194 = pneg %p60
        $region30: #{svd_forward.1} parent=23 // pred_check_branch
          %196 = sbr.rel (%p194) target = $region32
        $region31: #{svd_forward.1} parent=23 // pred_region
          %s197 = smul.u32 16, %s14
          %p198 = scmp.lt.s32.totalorder %s197, 31
          %s199 = scalar_select %p198, %s197, 31
          %s200 = smul.addr %s199, 8
          %s201 = scalar_lea.vmem %s1, %s200
          %s202 = smul.u32 16, %s14
        $region32: #{svd_forward.1} parent=23 // pred_fallthru
          _
        // Predicated region
        $region33: #{svd_forward.1} parent=23 // pred_check
          %p203 = pneg %p128
        $region34: #{svd_forward.1} parent=23 // pred_check_branch
          %205 = sbr.rel (%p203) target = $region36
        $region35: #{svd_forward.1} parent=23 // pred_region
          %p206 = scmp.lt.s32.totalorder %s14, 1
          %s207 = scalar_select %p206, %s14, 1
          %s208 = scalar_lea.vmem %s4, %s207
        $region36: #{svd_forward.1} parent=23 // pred_fallthru
          _
      $region24: #{svd_forward.1} parent=5 // pred_fallthru
        _
      %p209 = scmp.le.s32.totalorder 1, %s14
      %p210 = scmp.lt.s32.totalorder %s14, 3
      %p211 = pnand %p209, %p210
      %p212 = pneg %p211
      // Predicated region
      $region37: #{svd_forward.1} parent=5 // pred_check
        _
      $region38: #{svd_forward.1} parent=5 // pred_check_branch
        %214 = sbr.rel (%p211) target = $region40
      $region39: #{svd_forward.1} parent=5 // pred_region
        %s215 = ssub.s32 %s14, 1
        %s216 = smul.u32 16, %s19
        %p217 = scmp.lt.s32.totalorder %s216, 31
        %s218 = scalar_select %p217, %s216, 31
        %s219 = smul.addr %s218, 8
        %s220 = scalar_lea.vmem %s0, %s219
        %p221 = pneg %p40
        %p222 = pneg %p37
        %s223 = smul.u32 16, %s19
        %p224 = scmp.lt.s32.totalorder %s223, 31
        %s225 = scalar_select %p224, %s223, 31
        %s226 = smul.addr %s225, 8
        %s227 = scalar_lea.vmem %s1, %s226
        %p228 = pneg %p66
        %p229 = pneg %p63
        %p230 = pneg %p87
        %p231 = pneg %p84
        %p232 = pneg %p108
        %p233 = pneg %p105
        %p234 = scmp.lt.s32.totalorder %s19, 1
        %s235 = scalar_select %p234, %s19, 1
        %s236 = scalar_lea.vmem %s4, %s235
        %p237 = pneg %p134
        %p238 = pneg %p131
        %p239 = pneg %p160
        %p240 = pneg %p157
        %s241 = sand.u32 %s147, 1
        %s242 = scalar_lea.sflag [#allocation3], %s241
        %s243 = sand.u32 %s147, 1
        %s244 = scalar_lea.vmem [#allocation2], %s243
        %s245 = smul.u32 16, %s19
        %p246 = scmp.lt.s32.totalorder %s245, 31
        %s247 = scalar_select %p246, %s245, 31
        %s248 = smul.addr %s247, 8
        %s249 = scalar_lea.vmem %s0, %s248
        %s250 = smul.u32 16, %s19
        %s251 = smul.u32 16, %s19
        %p252 = scmp.lt.s32.totalorder %s251, 31
        %s253 = scalar_select %p252, %s251, 31
        %s254 = smul.addr %s253, 8
        %s255 = scalar_lea.vmem %s1, %s254
        %s256 = smul.u32 16, %s19
        %p257 = scmp.lt.s32.totalorder %s19, 1
        %s258 = scalar_select %p257, %s19, 1
        %s259 = scalar_lea.vmem %s4, %s258
        %v260 = vld [vmem:[%s249] sm:$0xff]
        %v261 = vld [vmem:[%s249 + $0x8] sm:$0xff]
        %v262 = vld [vmem:[%s249 + $0x10] sm:$0xff]
        %v263 = vld [vmem:[%s249 + $0x18] sm:$0xff]
        %v264 = vld [vmem:[%s249 + $0x20] sm:$0xff]
        %v265 = vld [vmem:[%s249 + $0x28] sm:$0xff]
        %v266 = vld [vmem:[%s249 + $0x30] sm:$0xff]
        %v267 = vld [vmem:[%s249 + $0x38] sm:$0xff]
        %v268 = vld [vmem:[%s249 + $0x40] sm:$0xff]
        %v269 = vld [vmem:[%s249 + $0x48] sm:$0xff]
        %v270 = vld [vmem:[%s249 + $0x50] sm:$0xff]
        %v271 = vld [vmem:[%s249 + $0x58] sm:$0xff]
        %v272 = vld [vmem:[%s249 + $0x60] sm:$0xff]
        %v273 = vld [vmem:[%s249 + $0x68] sm:$0xff]
        %v274 = vld [vmem:[%s249 + $0x70] sm:$0xff]
        %v275 = vld [vmem:[%s249 + $0x78] sm:$0xff]
        %v276 = vld [vmem:[%s255] sm:$0xff]
        %v277 = vld [vmem:[%s255 + $0x8] sm:$0xff]
        %v278 = vld [vmem:[%s255 + $0x10] sm:$0xff]
        %v279 = vld [vmem:[%s255 + $0x18] sm:$0xff]
        %v280 = vld [vmem:[%s255 + $0x20] sm:$0xff]
        %v281 = vld [vmem:[%s255 + $0x28] sm:$0xff]
        %v282 = vld [vmem:[%s255 + $0x30] sm:$0xff]
        %v283 = vld [vmem:[%s255 + $0x38] sm:$0xff]
        %v284 = vld [vmem:[%s255 + $0x40] sm:$0xff]
        %v285 = vld [vmem:[%s255 + $0x48] sm:$0xff]
        %v286 = vld [vmem:[%s255 + $0x50] sm:$0xff]
        %v287 = vld [vmem:[%s255 + $0x58] sm:$0xff]
        %v288 = vld [vmem:[%s255 + $0x60] sm:$0xff]
        %v289 = vld [vmem:[%s255 + $0x68] sm:$0xff]
        %v290 = vld [vmem:[%s255 + $0x70] sm:$0xff]
        %v291 = vld [vmem:[%s255 + $0x78] sm:$0xff]
        %v292 = vld [vmem:[%s2] sm:$0xff]
        %v293 = vld [vmem:[%s2 + $0x8] sm:$0xff]
        %v294 = vld [vmem:[%s2 + $0x10] sm:$0xff]
        %v295 = vld [vmem:[%s2 + $0x18] sm:$0xff]
        %v296 = vld [vmem:[%s2 + $0x20] sm:$0xff]
        %v297 = vld [vmem:[%s2 + $0x28] sm:$0xff]
        %v298 = vld [vmem:[%s2 + $0x30] sm:$0x3]
        %v299 = vld [vmem:[%s3] sm:$0xff]
        %v300 = vld [vmem:[%s3 + $0x8] sm:$0xff]
        %v301 = vld [vmem:[%s3 + $0x10] sm:$0xff]
        %v302 = vld [vmem:[%s3 + $0x18] sm:$0xff]
        %v303 = vld [vmem:[%s3 + $0x20] sm:$0xff]
        %v304 = vld [vmem:[%s3 + $0x28] sm:$0xff]
        %v305 = vld [vmem:[%s3 + $0x30] sm:$0xff]
        %v306 = vld [vmem:[%s3 + $0x38] sm:$0xf]
        %v307 = vlaneseq
        %v308 = vand.u32 %v307, 127
        %309 = vset.pattern.permute.xlu0 0
        %310 = vperm.xlu0 %309, %v260
        %v311 = vpop.permute.xlu0 %310
        %312 = vset.pattern.permute.xlu0 0
        %313 = vperm.xlu0 %312, %v261
        %v314 = vpop.permute.xlu0 %313
        %315 = vset.pattern.permute.xlu0 0
        %316 = vperm.xlu0 %315, %v262
        %v317 = vpop.permute.xlu0 %316
        %318 = vset.pattern.permute.xlu0 0
        %319 = vperm.xlu0 %318, %v263
        %v320 = vpop.permute.xlu0 %319
        %321 = vset.pattern.permute.xlu0 0
        %322 = vperm.xlu0 %321, %v264
        %v323 = vpop.permute.xlu0 %322
        %324 = vset.pattern.permute.xlu0 0
        %325 = vperm.xlu0 %324, %v265
        %v326 = vpop.permute.xlu0 %325
        %327 = vset.pattern.permute.xlu0 0
        %328 = vperm.xlu0 %327, %v266
        %v329 = vpop.permute.xlu0 %328
        %330 = vset.pattern.permute.xlu0 0
        %331 = vperm.xlu0 %330, %v267
        %v332 = vpop.permute.xlu0 %331
        %333 = vset.pattern.permute.xlu0 0
        %334 = vperm.xlu0 %333, %v268
        %v335 = vpop.permute.xlu0 %334
        %336 = vset.pattern.permute.xlu0 0
        %337 = vperm.xlu0 %336, %v269
        %v338 = vpop.permute.xlu0 %337
        %339 = vset.pattern.permute.xlu0 0
        %340 = vperm.xlu0 %339, %v270
        %v341 = vpop.permute.xlu0 %340
        %342 = vset.pattern.permute.xlu0 0
        %343 = vperm.xlu0 %342, %v271
        %v344 = vpop.permute.xlu0 %343
        %345 = vset.pattern.permute.xlu0 0
        %346 = vperm.xlu0 %345, %v272
        %v347 = vpop.permute.xlu0 %346
        %348 = vset.pattern.permute.xlu0 0
        %349 = vperm.xlu0 %348, %v273
        %v350 = vpop.permute.xlu0 %349
        %351 = vset.pattern.permute.xlu0 0
        %352 = vperm.xlu0 %351, %v274
        %v353 = vpop.permute.xlu0 %352
        %354 = vset.pattern.permute.xlu0 0
        %355 = vperm.xlu0 %354, %v275
        %v356 = vpop.permute.xlu0 %355
        %vm357 = vcmp.eq.s32.totalorder %v311, %v308
        %vm358 = vcmp.eq.s32.totalorder %v314, %v308
        %vm359 = vcmp.eq.s32.totalorder %v317, %v308
        %vm360 = vcmp.eq.s32.totalorder %v320, %v308
        %vm361 = vcmp.eq.s32.totalorder %v323, %v308
        %vm362 = vcmp.eq.s32.totalorder %v326, %v308
        %vm363 = vcmp.eq.s32.totalorder %v329, %v308
        %vm364 = vcmp.eq.s32.totalorder %v332, %v308
        %vm365 = vcmp.eq.s32.totalorder %v335, %v308
        %vm366 = vcmp.eq.s32.totalorder %v338, %v308
        %vm367 = vcmp.eq.s32.totalorder %v341, %v308
        %vm368 = vcmp.eq.s32.totalorder %v344, %v308
        %vm369 = vcmp.eq.s32.totalorder %v347, %v308
        %vm370 = vcmp.eq.s32.totalorder %v350, %v308
        %vm371 = vcmp.eq.s32.totalorder %v353, %v308
        %vm372 = vcmp.eq.s32.totalorder %v356, %v308
        %v373 = vsel %vm357, 1, 0
        %v374 = vsel %vm358, 1, 0
        %v375 = vsel %vm359, 1, 0
        %v376 = vsel %vm360, 1, 0
        %v377 = vsel %vm361, 1, 0
        %v378 = vsel %vm362, 1, 0
        %v379 = vsel %vm363, 1, 0
        %v380 = vsel %vm364, 1, 0
        %v381 = vsel %vm365, 1, 0
        %v382 = vsel %vm366, 1, 0
        %v383 = vsel %vm367, 1, 0
        %v384 = vsel %vm368, 1, 0
        %v385 = vsel %vm369, 1, 0
        %v386 = vsel %vm370, 1, 0
        %v387 = vsel %vm371, 1, 0
        %v388 = vsel %vm372, 1, 0
        %v389 = vcvt.s32.f32 %v373
        %v390 = vcvt.s32.f32 %v374
        %v391 = vcvt.s32.f32 %v375
        %v392 = vcvt.s32.f32 %v376
        %v393 = vcvt.s32.f32 %v377
        %v394 = vcvt.s32.f32 %v378
        %v395 = vcvt.s32.f32 %v379
        %v396 = vcvt.s32.f32 %v380
        %v397 = vcvt.s32.f32 %v381
        %v398 = vcvt.s32.f32 %v382
        %v399 = vcvt.s32.f32 %v383
        %v400 = vcvt.s32.f32 %v384
        %v401 = vcvt.s32.f32 %v385
        %v402 = vcvt.s32.f32 %v386
        %v403 = vcvt.s32.f32 %v387
        %v404 = vcvt.s32.f32 %v388
        %405 = vset.pattern.permute.xlu0 0
        %406 = vperm.xlu0 %405, %v276
        %v407 = vpop.permute.xlu0 %406
        %408 = vset.pattern.permute.xlu0 0
        %409 = vperm.xlu0 %408, %v277
        %v410 = vpop.permute.xlu0 %409
        %411 = vset.pattern.permute.xlu0 0
        %412 = vperm.xlu0 %411, %v278
        %v413 = vpop.permute.xlu0 %412
        %414 = vset.pattern.permute.xlu0 0
        %415 = vperm.xlu0 %414, %v279
        %v416 = vpop.permute.xlu0 %415
        %417 = vset.pattern.permute.xlu0 0
        %418 = vperm.xlu0 %417, %v280
        %v419 = vpop.permute.xlu0 %418
        %420 = vset.pattern.permute.xlu0 0
        %421 = vperm.xlu0 %420, %v281
        %v422 = vpop.permute.xlu0 %421
        %423 = vset.pattern.permute.xlu0 0
        %424 = vperm.xlu0 %423, %v282
        %v425 = vpop.permute.xlu0 %424
        %426 = vset.pattern.permute.xlu0 0
        %427 = vperm.xlu0 %426, %v283
        %v428 = vpop.permute.xlu0 %427
        %429 = vset.pattern.permute.xlu0 0
        %430 = vperm.xlu0 %429, %v284
        %v431 = vpop.permute.xlu0 %430
        %432 = vset.pattern.permute.xlu0 0
        %433 = vperm.xlu0 %432, %v285
        %v434 = vpop.permute.xlu0 %433
        %435 = vset.pattern.permute.xlu0 0
        %436 = vperm.xlu0 %435, %v286
        %v437 = vpop.permute.xlu0 %436
        %438 = vset.pattern.permute.xlu0 0
        %439 = vperm.xlu0 %438, %v287
        %v440 = vpop.permute.xlu0 %439
        %441 = vset.pattern.permute.xlu0 0
        %442 = vperm.xlu0 %441, %v288
        %v443 = vpop.permute.xlu0 %442
        %444 = vset.pattern.permute.xlu0 0
        %445 = vperm.xlu0 %444, %v289
        %v446 = vpop.permute.xlu0 %445
        %447 = vset.pattern.permute.xlu0 0
        %448 = vperm.xlu0 %447, %v290
        %v449 = vpop.permute.xlu0 %448
        %450 = vset.pattern.permute.xlu0 0
        %451 = vperm.xlu0 %450, %v291
        %v452 = vpop.permute.xlu0 %451
        %vm453 = vcmp.eq.s32.totalorder %v407, %v308
        %vm454 = vcmp.eq.s32.totalorder %v410, %v308
        %vm455 = vcmp.eq.s32.totalorder %v413, %v308
        %vm456 = vcmp.eq.s32.totalorder %v416, %v308
        %vm457 = vcmp.eq.s32.totalorder %v419, %v308
        %vm458 = vcmp.eq.s32.totalorder %v422, %v308
        %vm459 = vcmp.eq.s32.totalorder %v425, %v308
        %vm460 = vcmp.eq.s32.totalorder %v428, %v308
        %vm461 = vcmp.eq.s32.totalorder %v431, %v308
        %vm462 = vcmp.eq.s32.totalorder %v434, %v308
        %vm463 = vcmp.eq.s32.totalorder %v437, %v308
        %vm464 = vcmp.eq.s32.totalorder %v440, %v308
        %vm465 = vcmp.eq.s32.totalorder %v443, %v308
        %vm466 = vcmp.eq.s32.totalorder %v446, %v308
        %vm467 = vcmp.eq.s32.totalorder %v449, %v308
        %vm468 = vcmp.eq.s32.totalorder %v452, %v308
        %v469 = vsel %vm453, 1, 0
        %v470 = vsel %vm454, 1, 0
        %v471 = vsel %vm455, 1, 0
        %v472 = vsel %vm456, 1, 0
        %v473 = vsel %vm457, 1, 0
        %v474 = vsel %vm458, 1, 0
        %v475 = vsel %vm459, 1, 0
        %v476 = vsel %vm460, 1, 0
        %v477 = vsel %vm461, 1, 0
        %v478 = vsel %vm462, 1, 0
        %v479 = vsel %vm463, 1, 0
        %v480 = vsel %vm464, 1, 0
        %v481 = vsel %vm465, 1, 0
        %v482 = vsel %vm466, 1, 0
        %v483 = vsel %vm467, 1, 0
        %v484 = vsel %vm468, 1, 0
        %v485 = vcvt.s32.f32 %v469
        %v486 = vcvt.s32.f32 %v470
        %v487 = vcvt.s32.f32 %v471
        %v488 = vcvt.s32.f32 %v472
        %v489 = vcvt.s32.f32 %v473
        %v490 = vcvt.s32.f32 %v474
        %v491 = vcvt.s32.f32 %v475
        %v492 = vcvt.s32.f32 %v476
        %v493 = vcvt.s32.f32 %v477
        %v494 = vcvt.s32.f32 %v478
        %v495 = vcvt.s32.f32 %v479
        %v496 = vcvt.s32.f32 %v480
        %v497 = vcvt.s32.f32 %v481
        %v498 = vcvt.s32.f32 %v482
        %v499 = vcvt.s32.f32 %v483
        %v500 = vcvt.s32.f32 %v484
        %vm501 = vcmask 408576
        %v503 = vsel %vm501, %v389, 0
        %v506 = vsel %vm501, %v390, 0
        %v509 = vsel %vm501, %v391, 0
        %v512 = vsel %vm501, %v392, 0
        %v515 = vsel %vm501, %v393, 0
        %v518 = vsel %vm501, %v394, 0
        %v521 = vsel %vm501, %v395, 0
        %v524 = vsel %vm501, %v396, 0
        %v527 = vsel %vm501, %v397, 0
        %v530 = vsel %vm501, %v398, 0
        %v533 = vsel %vm501, %v399, 0
        %v536 = vsel %vm501, %v400, 0
        %v539 = vsel %vm501, %v401, 0
        %v542 = vsel %vm501, %v402, 0
        %v545 = vsel %vm501, %v403, 0
        %v548 = vsel %vm501, %v404, 0
        %vm550 = vcmask 1041408
        %v552 = vsel %vm550, %v298, 0
        %554 = vmatpush.msra.mxu0 0.0
        %555 = vmatpush.msra.mxu0 0.0
        %556 = vmatpush.msra.mxu0 0.0
        %557 = vmatpush.msra.mxu0 0.0
        %558 = vmatpush.msra.mxu0 0.0
        %559 = vmatpush.msra.mxu0 0.0
        %560 = vmatpush.msra.mxu0 0.0
        %561 = vmatpush.msra.mxu0 0.0
        %562 = vmatpush.msra.mxu0 0.0
        %563 = vmatpush.msra.mxu0 %v552
        %564 = vmatpush.msra.mxu0 %v297
        %565 = vmatpush.msra.mxu0 %v296
        %566 = vmatpush.msra.mxu0 %v295
        %567 = vmatpush.msra.mxu0 %v294
        %568 = vmatpush.msra.mxu0 %v293
        %569 = vmatpush.msra.mxu0 %v292
        %570 = vmatmul.f32.gmra.mxu0 %v503
        %v571 = vpop.f32.mrf.mxu0
        %v572 = vadd.f32 0.0, %v571
        %573 = vmatmul.f32.gmra.mxu0 %v506
        %v574 = vpop.f32.mrf.mxu0
        %v575 = vadd.f32 0.0, %v574
        %576 = vmatmul.f32.gmra.mxu0 %v509
        %v577 = vpop.f32.mrf.mxu0
        %v578 = vadd.f32 0.0, %v577
        %579 = vmatmul.f32.gmra.mxu0 %v512
        %v580 = vpop.f32.mrf.mxu0
        %v581 = vadd.f32 0.0, %v580
        %582 = vmatmul.f32.gmra.mxu0 %v515
        %v583 = vpop.f32.mrf.mxu0
        %v584 = vadd.f32 0.0, %v583
        %585 = vmatmul.f32.gmra.mxu0 %v518
        %v586 = vpop.f32.mrf.mxu0
        %v587 = vadd.f32 0.0, %v586
        %588 = vmatmul.f32.gmra.mxu0 %v521
        %v589 = vpop.f32.mrf.mxu0
        %v590 = vadd.f32 0.0, %v589
        %591 = vmatmul.f32.gmra.mxu0 %v524
        %v592 = vpop.f32.mrf.mxu0
        %v593 = vadd.f32 0.0, %v592
        %594 = vmatmul.f32.gmra.mxu0 %v527
        %v595 = vpop.f32.mrf.mxu0
        %v596 = vadd.f32 0.0, %v595
        %597 = vmatmul.f32.gmra.mxu0 %v530
        %v598 = vpop.f32.mrf.mxu0
        %v599 = vadd.f32 0.0, %v598
        %600 = vmatmul.f32.gmra.mxu0 %v533
        %v601 = vpop.f32.mrf.mxu0
        %v602 = vadd.f32 0.0, %v601
        %603 = vmatmul.f32.gmra.mxu0 %v536
        %v604 = vpop.f32.mrf.mxu0
        %v605 = vadd.f32 0.0, %v604
        %606 = vmatmul.f32.gmra.mxu0 %v539
        %v607 = vpop.f32.mrf.mxu0
        %v608 = vadd.f32 0.0, %v607
        %609 = vmatmul.f32.gmra.mxu0 %v542
        %v610 = vpop.f32.mrf.mxu0
        %v611 = vadd.f32 0.0, %v610
        %612 = vmatmul.f32.gmra.mxu0 %v545
        %v613 = vpop.f32.mrf.mxu0
        %v614 = vadd.f32 0.0, %v613
        %615 = vmatmul.f32.gmra.mxu0 %v548
        %v616 = vpop.f32.mrf.mxu0
        %v617 = vadd.f32 0.0, %v616
        %618 = vdwg.mxu0
        %vm619 = vcmask 490496
        %v621 = vsel %vm619, %v485, 0
        %v624 = vsel %vm619, %v486, 0
        %v627 = vsel %vm619, %v487, 0
        %v630 = vsel %vm619, %v488, 0
        %v633 = vsel %vm619, %v489, 0
        %v636 = vsel %vm619, %v490, 0
        %v639 = vsel %vm619, %v491, 0
        %v642 = vsel %vm619, %v492, 0
        %v645 = vsel %vm619, %v493, 0
        %v648 = vsel %vm619, %v494, 0
        %v651 = vsel %vm619, %v495, 0
        %v654 = vsel %vm619, %v496, 0
        %v657 = vsel %vm619, %v497, 0
        %v660 = vsel %vm619, %v498, 0
        %v663 = vsel %vm619, %v499, 0
        %v666 = vsel %vm619, %v500, 0
        %vm668 = vcmask 1043456
        %v670 = vsel %vm668, %v306, 0
        %672 = vmatpush.msra.mxu0 0.0
        %673 = vmatpush.msra.mxu0 0.0
        %674 = vmatpush.msra.mxu0 0.0
        %675 = vmatpush.msra.mxu0 0.0
        %676 = vmatpush.msra.mxu0 0.0
        %677 = vmatpush.msra.mxu0 0.0
        %678 = vmatpush.msra.mxu0 0.0
        %679 = vmatpush.msra.mxu0 0.0
        %680 = vmatpush.msra.mxu0 %v670
        %681 = vmatpush.msra.mxu0 %v305
        %682 = vmatpush.msra.mxu0 %v304
        %683 = vmatpush.msra.mxu0 %v303
        %684 = vmatpush.msra.mxu0 %v302
        %685 = vmatpush.msra.mxu0 %v301
        %686 = vmatpush.msra.mxu0 %v300
        %687 = vmatpush.msra.mxu0 %v299
        %688 = vmatmul.f32.gmra.mxu0 %v621
        %v689 = vpop.f32.mrf.mxu0
        %v690 = vadd.f32 0.0, %v689
        %691 = vmatmul.f32.gmra.mxu0 %v624
        %v692 = vpop.f32.mrf.mxu0
        %v693 = vadd.f32 0.0, %v692
        %694 = vmatmul.f32.gmra.mxu0 %v627
        %v695 = vpop.f32.mrf.mxu0
        %v696 = vadd.f32 0.0, %v695
        %697 = vmatmul.f32.gmra.mxu0 %v630
        %v698 = vpop.f32.mrf.mxu0
        %v699 = vadd.f32 0.0, %v698
        %700 = vmatmul.f32.gmra.mxu0 %v633
        %v701 = vpop.f32.mrf.mxu0
        %v702 = vadd.f32 0.0, %v701
        %703 = vmatmul.f32.gmra.mxu0 %v636
        %v704 = vpop.f32.mrf.mxu0
        %v705 = vadd.f32 0.0, %v704
        %706 = vmatmul.f32.gmra.mxu0 %v639
        %v707 = vpop.f32.mrf.mxu0
        %v708 = vadd.f32 0.0, %v707
        %709 = vmatmul.f32.gmra.mxu0 %v642
        %v710 = vpop.f32.mrf.mxu0
        %v711 = vadd.f32 0.0, %v710
        %712 = vmatmul.f32.gmra.mxu0 %v645
        %v713 = vpop.f32.mrf.mxu0
        %v714 = vadd.f32 0.0, %v713
        %715 = vmatmul.f32.gmra.mxu0 %v648
        %v716 = vpop.f32.mrf.mxu0
        %v717 = vadd.f32 0.0, %v716
        %718 = vmatmul.f32.gmra.mxu0 %v651
        %v719 = vpop.f32.mrf.mxu0
        %v720 = vadd.f32 0.0, %v719
        %721 = vmatmul.f32.gmra.mxu0 %v654
        %v722 = vpop.f32.mrf.mxu0
        %v723 = vadd.f32 0.0, %v722
        %724 = vmatmul.f32.gmra.mxu0 %v657
        %v725 = vpop.f32.mrf.mxu0
        %v726 = vadd.f32 0.0, %v725
        %727 = vmatmul.f32.gmra.mxu0 %v660
        %v728 = vpop.f32.mrf.mxu0
        %v729 = vadd.f32 0.0, %v728
        %730 = vmatmul.f32.gmra.mxu0 %v663
        %v731 = vpop.f32.mrf.mxu0
        %v732 = vadd.f32 0.0, %v731
        %733 = vmatmul.f32.gmra.mxu0 %v666
        %v734 = vpop.f32.mrf.mxu0
        %v735 = vadd.f32 0.0, %v734
        %736 = vdwg.mxu0
        %v737 = vmul.f32 %v572, %v690
        %v738 = vmul.f32 %v575, %v693
        %v739 = vmul.f32 %v578, %v696
        %v740 = vmul.f32 %v581, %v699
        %v741 = vmul.f32 %v584, %v702
        %v742 = vmul.f32 %v587, %v705
        %v743 = vmul.f32 %v590, %v708
        %v744 = vmul.f32 %v593, %v711
        %v745 = vmul.f32 %v596, %v714
        %v746 = vmul.f32 %v599, %v717
        %v747 = vmul.f32 %v602, %v720
        %v748 = vmul.f32 %v605, %v723
        %v749 = vmul.f32 %v608, %v726
        %v750 = vmul.f32 %v611, %v729
        %v751 = vmul.f32 %v614, %v732
        %v752 = vmul.f32 %v617, %v735
        %v753 = vld [vmem:[%s259] sm:$0x1]
        %vm754 = vcmask 261120
        %v756 = vsel %vm754, 1.0, 0
        %v759 = vsel %vm754, %v737, 0
        %v762 = vsel %vm754, %v738, 0
        %v765 = vsel %vm754, %v739, 0
        %v768 = vsel %vm754, %v740, 0
        %v771 = vsel %vm754, %v741, 0
        %v774 = vsel %vm754, %v742, 0
        %v777 = vsel %vm754, %v743, 0
        %v780 = vsel %vm754, %v744, 0
        %v783 = vsel %vm754, %v745, 0
        %v786 = vsel %vm754, %v746, 0
        %v789 = vsel %vm754, %v747, 0
        %v792 = vsel %vm754, %v748, 0
        %v795 = vsel %vm754, %v749, 0
        %v798 = vsel %vm754, %v750, 0
        %v801 = vsel %vm754, %v751, 0
        %v804 = vsel %vm754, %v752, 0
        %806 = vmatpush.xpose.msra.mxu0 %v804
        %807 = vmatpush.xpose.msra.mxu0 %v801
        %808 = vmatpush.xpose.msra.mxu0 %v798
        %809 = vmatpush.xpose.msra.mxu0 %v795
        %810 = vmatpush.xpose.msra.mxu0 %v792
        %811 = vmatpush.xpose.msra.mxu0 %v789
        %812 = vmatpush.xpose.msra.mxu0 %v786
        %813 = vmatpush.xpose.msra.mxu0 %v783
        %814 = vmatpush.xpose.msra.mxu0 %v780
        %815 = vmatpush.xpose.msra.mxu0 %v777
        %816 = vmatpush.xpose.msra.mxu0 %v774
        %817 = vmatpush.xpose.msra.mxu0 %v771
        %818 = vmatpush.xpose.msra.mxu0 %v768
        %819 = vmatpush.xpose.msra.mxu0 %v765
        %820 = vmatpush.xpose.msra.mxu0 %v762
        %821 = vmatpush.xpose.msra.mxu0 %v759
        %822 = vmatmul.f32.gmra.mxu0 %v756
        %v823 = vpop.f32.mrf.mxu0
        %v824 = vadd.f32 %v753, %v823
        %825 = vdwg.mxu0
        %826 = vst [vmem:[%s244] sm:$0x1] %v824
        %s827 = sand.u32 %s147, 1
        %s828 = scalar_lea.sflag [#allocation3], %s827
        %s829 = sand.u32 %s147, 1
        %s830 = scalar_lea.vmem [#allocation2], %s829
        // Predicated region
        $region41: #{svd_forward.1} parent=39 // pred_check
          %p831 = pneg %p157
        $region42: #{svd_forward.1} parent=39 // pred_check_branch
          %833 = sbr.rel (%p831) target = $region44
        $region43: #{svd_forward.1} parent=39 // pred_region
          %835 = vsyncadd %s828, 0
          %s836 = scalar_lea.hbm %s5, %s19
          %s838 = sshll.u32 %s830, 4
          %s839 = int_to_ptr.vmem [resolvable:$true] %s838
          %s840 = sshll.u32 %s836, 4
          %s841 = int_to_ptr.hbm [resolvable:$true] %s840
          %843 = dma.vmem_to_hbm [thread:$0]  %s839, 16, %s841, %s828
        $region44: #{svd_forward.1} parent=39 // pred_fallthru
          _
      $region40: #{svd_forward.1} parent=5 // pred_fallthru
        _
      %p844 = scmp.le.s32.totalorder 2, %s14
      // Predicated region
      $region45: #{svd_forward.1} parent=5 // pred_check
        %p845 = pneg %p844
      $region46: #{svd_forward.1} parent=5 // pred_check_branch
        %847 = sbr.rel (%p845) target = $region48
      $region47: #{svd_forward.1} parent=5 // pred_region
        %s848 = ssub.s32 %s14, 2
        // Predicated region
        $region49: #{svd_forward.1} parent=47 // pred_check
          %p849 = pneg %p163
        $region50: #{svd_forward.1} parent=47 // pred_check_branch
          %851 = sbr.rel (%p849) target = $region52
        $region51: #{svd_forward.1} parent=47 // pred_region
          %s852 = sand.u32 %s148, 1
          %s853 = scalar_lea.sflag [#allocation3], %s852
          %s854 = sand.u32 %s148, 1
          %s855 = scalar_lea.vmem [#allocation2], %s854
          %857 = dma.done %s853, 16
        $region52: #{svd_forward.1} parent=47 // pred_fallthru
          _
      $region48: #{svd_forward.1} parent=5 // pred_fallthru
        _
    $region6: #{svd_forward.1} parent=1 // loop_footer
      %s18 = sadd.s32 1, %s14
    $region7: #{svd_forward.1} parent=1 // loop_footer_branch
      %13 = sbr.rel target = $region3
    $region8: #{svd_forward.1} parent=1 // loop_exit
      _
    %858 = vsyncpa [#allocation3], 1
    %s859 = scalar_lea.sflag [#allocation3], 1
    %860 = vsyncpa %s859, 1

</llo_original>
